<compile_context>
chip_gen: v5e
topology: v5e:2x2
jax: 0.10.0
libtpu: 0.0.40
codegen_flags: <defaults>
</compile_context>

<pallas_src>
import functools

import jax
import jax.numpy as jnp
from jax.experimental import pallas as pl
from jax.experimental.pallas import tpu as pltpu


# ---------------------------------------------------------------------------
# Fused Pallas kernel: conv stack + activations + MSE loss
# ---------------------------------------------------------------------------
def _cnn_fused_kernel(*refs, n_layers, slope):
    """Fused forward pass.

    refs layout:
      refs[0]            x slab      (B*H, W*C_in)    f32 VMEM
      refs[1]            target slab (B*H, W*C_out)   f32 VMEM
      refs[2]            row-shift matrix P_up (R, R) f32 VMEM   (row h -> h+1, masked)
      refs[3]            row-shift matrix P_dn (R, R) f32 VMEM   (row h -> h-1, masked)
      refs[4+2i]         banded weights layer i (3, W*Cin_i, W*Cout_i)
      refs[5+2i]         tiled bias layer i     (1, W*Cout_i)
      refs[-2]           out slab  (B*H, W*C_out) f32 VMEM
      refs[-1]           loss      (1, 1)         f32 SMEM
    """
    x_ref, t_ref, up_ref, dn_ref = refs[0], refs[1], refs[2], refs[3]
    out_ref, loss_ref = refs[-2], refs[-1]

    a = x_ref[...]
    p_up = up_ref[...]
    p_dn = dn_ref[...]

    for i in range(n_layers):
        w_ref = refs[4 + 2 * i]   # (3, W*Cin, W*Cout), stacked over kh
        b_ref = refs[5 + 2 * i]   # (1, W*Cout)

        # Rows of the image shifted by +/-1 in H with zero padding & batch
        # boundaries handled by the (masked) permutation matrices.
        a_up = jnp.dot(p_up, a, preferred_element_type=jnp.float32)  # row h+1
        a_dn = jnp.dot(p_dn, a, preferred_element_type=jnp.float32)  # row h-1

        # 3x3 conv = 3 dense matmuls against block-banded (Toeplitz-over-W)
        # weight matrices; the W shift + zero padding is inside the band.
        acc = jnp.dot(a, w_ref[1], preferred_element_type=jnp.float32)          # kh=1
        acc = acc + jnp.dot(a_up, w_ref[2], preferred_element_type=jnp.float32)  # kh=2
        acc = acc + jnp.dot(a_dn, w_ref[0], preferred_element_type=jnp.float32)  # kh=0

        acc = acc + b_ref[...]
        acc = jnp.where(acc > 0, acc, slope * acc)      # LeakyReLU(0.1)
        if i == n_layers - 1:
            acc = jax.nn.sigmoid(acc)                   # output_activation
        a = acc

    out_ref[...] = a.astype(out_ref.dtype)

    # MSELoss(reduction='mean') against the target slab (same layout as out).
    d = a - t_ref[...]
    loss_ref[0, 0] = jnp.sum(d * d) * (1.0 / float(d.size))


# ---------------------------------------------------------------------------
# Wrapper-side parameter preparation (pure layout work, done once per weights)
# ---------------------------------------------------------------------------
def _banded_weight(w_kw_io, W):
    """Build the (W*Cin, W*Cout) block-banded matrix for one kh tap.

    w_kw_io: (3, Cin, Cout) conv taps over kw for a fixed kh (HWIO slice).
    M[w_in*Cin+ci, w_out*Cout+co] = w_kw_io[w_in-w_out+1, ci, co] if |w_in-w_out|<=1 else 0
    """
    Cin, Cout = w_kw_io.shape[1], w_kw_io.shape[2]
    w_in = jnp.arange(W)[:, None]
    w_out = jnp.arange(W)[None, :]
    d = w_in - w_out                                   # == kw - 1 inside the band
    taps = w_kw_io[jnp.clip(d + 1, 0, 2)]              # (W, W, Cin, Cout)
    mask = (jnp.abs(d) <= 1)[:, :, None, None]
    T = jnp.where(mask, taps, 0.0)                     # (w_in, w_out, ci, co)
    return T.transpose(0, 2, 1, 3).reshape(W * Cin, W * Cout)


def prepare_params(params, W):
    """(3,3,Cin,Cout) HWIO weights + (Cout,) bias -> banded weights + tiled bias."""
    prepped = []
    for w_hwio, b in params:
        cout = w_hwio.shape[3]
        banded = jnp.stack([_banded_weight(w_hwio[kh], W) for kh in range(3)], axis=0)
        b_tiled = jnp.tile(b, W).reshape(1, W * cout)
        prepped.append((banded.astype(jnp.float32), b_tiled.astype(jnp.float32)))
    return prepped


def _row_shift_mats(B, H):
    """Masked row-shift matrices on the (B*H) row axis of the slab."""
    R = B * H
    r = jnp.arange(R)
    h = r % H
    up = ((r[None, :] == r[:, None] + 1) & (h[:, None] < H - 1)).astype(jnp.float32)
    dn = ((r[None, :] == r[:, None] - 1) & (h[:, None] > 0)).astype(jnp.float32)
    return up, dn


# ---------------------------------------------------------------------------
# Forward pass
# ---------------------------------------------------------------------------
def cnn_forward(prepped_params, x_nchw, y=None):
    """Mirrors CNN.forward: returns (out, loss, None)."""
    B, C, H, W = x_nchw.shape
    R = B * H
    # NCHW -> NHWC -> lane-dense slab (B*H, W*C); pure view reshapes + one transpose.
    x_slab = jnp.transpose(x_nchw, (0, 2, 3, 1)).reshape(R, W * C)
    target = x_nchw if y is None else y
    t_slab = jnp.transpose(target, (0, 2, 3, 1)).reshape(R, -1)
    p_up, p_dn = _row_shift_mats(B, H)

    n_layers = len(prepped_params)
    c_out = prepped_params[-1][1].shape[1] // W
    flat = []
    for wb in prepped_params:
        flat.extend(wb)

    # TODO(synk): the PyTorch try/except ValueError -> loss=None path for
    # shape-mismatched targets has no runtime equivalent (shape mismatch is a
    # trace-time error in JAX); only matching-shape targets are supported.
    kernel = functools.partial(_cnn_fused_kernel, n_layers=n_layers, slope=0.1)
    n_in = 4 + 2 * n_layers
    out_slab, loss = pl.pallas_call(
        kernel,
        out_shape=(jax.ShapeDtypeStruct((R, W * c_out), jnp.float32),
                   jax.ShapeDtypeStruct((1, 1), jnp.float32)),
        in_specs=[pl.BlockSpec(memory_space=pltpu.MemorySpace.VMEM)] * n_in,
        out_specs=(pl.BlockSpec(memory_space=pltpu.MemorySpace.VMEM),
                   pl.BlockSpec(memory_space=pltpu.MemorySpace.SMEM)),
    )(x_slab, t_slab, p_up, p_dn, *flat)

    out_nchw = jnp.transpose(out_slab.reshape(B, H, W, c_out), (0, 3, 1, 2))
    return out_nchw, loss[0, 0], None


# ---------------------------------------------------------------------------
# Init + pure-JAX reference (for self-check only)
# ---------------------------------------------------------------------------
def init_params(key, in_channel, hidden_channels, output_channel):
    """PyTorch-style uniform(-1/sqrt(fan_in), 1/sqrt(fan_in)) init; HWIO weights."""
    params = []
    channels = list(hidden_channels) + [output_channel]
    cin = in_channel
    for cout in channels:
        key, kw, kb = jax.random.split(key, 3)
        fan_in = cin * 3 * 3
        bound = 1.0 / float(jnp.sqrt(float(fan_in)))
        w = jax.random.uniform(kw, (3, 3, cin, cout), jnp.float32, -bound, bound)
        b = jax.random.uniform(kb, (cout,), jnp.float32, -bound, bound)
        params.append((w, b))
        cin = cout
    return params


def reference_forward(params, x_nchw):
    h = jnp.transpose(x_nchw, (0, 2, 3, 1))
    n = len(params)
    for i, (w, b) in enumerate(params):
        h = jax.lax.conv_general_dilated(
            h, w, window_strides=(1, 1), padding=((1, 1), (1, 1)),
            dimension_numbers=("NHWC", "HWIO", "NHWC"))
        h = h + b
        h = jnp.where(h > 0, h, 0.1 * h)
        if i == n - 1:
            h = jax.nn.sigmoid(h)
    out = jnp.transpose(h, (0, 3, 1, 2))
    loss = jnp.mean((out - x_nchw) ** 2)
    return out, loss


# ---------------------------------------------------------------------------
if __name__ == "__main__":
    B, C, H, W = 2, 4, 16, 16
    hidden_channels = [8, 8]
    output_channel = C  # MSE(out, x) well-defined (flatten=False branch)

    key = jax.random.PRNGKey(0)
    kx, kp = jax.random.split(key)
    x = jax.random.normal(kx, (B, C, H, W), jnp.float32)
    params = init_params(kp, C, hidden_channels, output_channel)
    prepped = prepare_params(params, W)

    fwd = jax.jit(cnn_forward)
    out, loss, _ = fwd(prepped, x)
    jax.block_until_ready((out, loss))

    assert out.shape == (B, output_channel, H, W), out.shape
    assert loss.shape == (), loss.shape
    assert bool(jnp.isfinite(loss)), "loss is not finite"

    # Numerical self-check against a pure-JAX reference of the same module.
    ref_out, ref_loss = reference_forward(params, x)
    assert bool(jnp.allclose(out, ref_out, atol=1e-3, rtol=1e-3)), "out mismatch"
    assert bool(jnp.allclose(loss, ref_loss, atol=1e-3, rtol=1e-3)), "loss mismatch"

    print("KERNEL_OK")
</pallas_src>

<mosaic_0001>
module attributes {stable_mosaic.version = 11 : i64} {
  func.func @_cnn_fused_kernel(%arg0: memref<32x64xf32, #tpu.memory_space<vmem>>, %arg1: memref<32x64xf32, #tpu.memory_space<vmem>>, %arg2: memref<32x32xf32, #tpu.memory_space<vmem>>, %arg3: memref<32x32xf32, #tpu.memory_space<vmem>>, %arg4: memref<3x64x128xf32, #tpu.memory_space<vmem>>, %arg5: memref<1x128xf32, #tpu.memory_space<vmem>>, %arg6: memref<3x128x128xf32, #tpu.memory_space<vmem>>, %arg7: memref<1x128xf32, #tpu.memory_space<vmem>>, %arg8: memref<3x128x64xf32, #tpu.memory_space<vmem>>, %arg9: memref<1x64xf32, #tpu.memory_space<vmem>>, %arg10: memref<32x64xf32, #tpu.memory_space<vmem>>, %arg11: memref<1x1xf32, #tpu.memory_space<smem>>) attributes {dimension_semantics = [], scalar_prefetch = 0 : i64, scratch_operands = 0 : i64, tpu.core_type = #tpu.core_type<tc>} {
    %c0 = arith.constant 0 : index
    %c0_0 = arith.constant 0 : index
    %0 = vector.load %arg0[%c0, %c0_0] : memref<32x64xf32, #tpu.memory_space<vmem>>, vector<32x64xf32>
    %c0_1 = arith.constant 0 : index
    %c0_2 = arith.constant 0 : index
    %1 = vector.load %arg2[%c0_1, %c0_2] : memref<32x32xf32, #tpu.memory_space<vmem>>, vector<32x32xf32>
    %c0_3 = arith.constant 0 : index
    %c0_4 = arith.constant 0 : index
    %2 = vector.load %arg3[%c0_3, %c0_4] : memref<32x32xf32, #tpu.memory_space<vmem>>, vector<32x32xf32>
    %cst = arith.constant dense<0.000000e+00> : vector<32x64xf32>
    %3 = tpu.matmul %1, %0, %cst {dimension_numbers = #tpu.dot_dimension_numbers<[1], [0], [0], [1], [0, 0, 1, 1], [], []>} : vector<32x32xf32>, vector<32x64xf32>, vector<32x64xf32> -> vector<32x64xf32>
    %cst_5 = arith.constant dense<0.000000e+00> : vector<32x64xf32>
    %4 = tpu.matmul %2, %0, %cst_5 {dimension_numbers = #tpu.dot_dimension_numbers<[1], [0], [0], [1], [0, 0, 1, 1], [], []>} : vector<32x32xf32>, vector<32x64xf32>, vector<32x64xf32> -> vector<32x64xf32>
    %c1 = arith.constant 1 : index
    %c0_6 = arith.constant 0 : index
    %c0_7 = arith.constant 0 : index
    %5 = vector.load %arg4[%c1, %c0_6, %c0_7] : memref<3x64x128xf32, #tpu.memory_space<vmem>>, vector<1x64x128xf32>
    %6 = vector.shape_cast %5 : vector<1x64x128xf32> to vector<64x128xf32>
    %cst_8 = arith.constant dense<0.000000e+00> : vector<32x128xf32>
    %7 = tpu.matmul %0, %6, %cst_8 {dimension_numbers = #tpu.dot_dimension_numbers<[1], [0], [0], [1], [0, 0, 1, 1], [], []>} : vector<32x64xf32>, vector<64x128xf32>, vector<32x128xf32> -> vector<32x128xf32>
    %c2 = arith.constant 2 : index
    %c0_9 = arith.constant 0 : index
    %c0_10 = arith.constant 0 : index
    %8 = vector.load %arg4[%c2, %c0_9, %c0_10] : memref<3x64x128xf32, #tpu.memory_space<vmem>>, vector<1x64x128xf32>
    %9 = vector.shape_cast %8 : vector<1x64x128xf32> to vector<64x128xf32>
    %cst_11 = arith.constant dense<0.000000e+00> : vector<32x128xf32>
    %10 = tpu.matmul %3, %9, %cst_11 {dimension_numbers = #tpu.dot_dimension_numbers<[1], [0], [0], [1], [0, 0, 1, 1], [], []>} : vector<32x64xf32>, vector<64x128xf32>, vector<32x128xf32> -> vector<32x128xf32>
    %11 = arith.addf %7, %10 : vector<32x128xf32>
    %c0_12 = arith.constant 0 : index
    %c0_13 = arith.constant 0 : index
    %c0_14 = arith.constant 0 : index
    %12 = vector.load %arg4[%c0_12, %c0_13, %c0_14] : memref<3x64x128xf32, #tpu.memory_space<vmem>>, vector<1x64x128xf32>
    %13 = vector.shape_cast %12 : vector<1x64x128xf32> to vector<64x128xf32>
    %cst_15 = arith.constant dense<0.000000e+00> : vector<32x128xf32>
    %14 = tpu.matmul %4, %13, %cst_15 {dimension_numbers = #tpu.dot_dimension_numbers<[1], [0], [0], [1], [0, 0, 1, 1], [], []>} : vector<32x64xf32>, vector<64x128xf32>, vector<32x128xf32> -> vector<32x128xf32>
    %15 = arith.addf %11, %14 : vector<32x128xf32>
    %c0_16 = arith.constant 0 : index
    %c0_17 = arith.constant 0 : index
    %16 = vector.load %arg5[%c0_16, %c0_17] : memref<1x128xf32, #tpu.memory_space<vmem>>, vector<1x128xf32>
    %17 = vector.broadcast %16 : vector<1x128xf32> to vector<32x128xf32>
    %18 = arith.addf %15, %17 : vector<32x128xf32>
    %cst_18 = arith.constant 0.000000e+00 : f32
    %19 = vector.broadcast %cst_18 : f32 to vector<32x128xf32>
    %20 = arith.cmpf ogt, %18, %19 : vector<32x128xf32>
    %cst_19 = arith.constant 1.000000e-01 : f32
    %21 = vector.broadcast %cst_19 : f32 to vector<32x128xf32>
    %22 = arith.mulf %21, %18 : vector<32x128xf32>
    %23 = arith.select %20, %18, %22 : vector<32x128xi1>, vector<32x128xf32>
    %cst_20 = arith.constant dense<0.000000e+00> : vector<32x128xf32>
    %24 = tpu.matmul %1, %23, %cst_20 {dimension_numbers = #tpu.dot_dimension_numbers<[1], [0], [0], [1], [0, 0, 1, 1], [], []>} : vector<32x32xf32>, vector<32x128xf32>, vector<32x128xf32> -> vector<32x128xf32>
    %cst_21 = arith.constant dense<0.000000e+00> : vector<32x128xf32>
    %25 = tpu.matmul %2, %23, %cst_21 {dimension_numbers = #tpu.dot_dimension_numbers<[1], [0], [0], [1], [0, 0, 1, 1], [], []>} : vector<32x32xf32>, vector<32x128xf32>, vector<32x128xf32> -> vector<32x128xf32>
    %c1_22 = arith.constant 1 : index
    %c0_23 = arith.constant 0 : index
    %c0_24 = arith.constant 0 : index
    %26 = vector.load %arg6[%c1_22, %c0_23, %c0_24] : memref<3x128x128xf32, #tpu.memory_space<vmem>>, vector<1x128x128xf32>
    %27 = vector.shape_cast %26 : vector<1x128x128xf32> to vector<128x128xf32>
    %cst_25 = arith.constant dense<0.000000e+00> : vector<32x128xf32>
    %28 = tpu.matmul %23, %27, %cst_25 {dimension_numbers = #tpu.dot_dimension_numbers<[1], [0], [0], [1], [0, 0, 1, 1], [], []>} : vector<32x128xf32>, vector<128x128xf32>, vector<32x128xf32> -> vector<32x128xf32>
    %c2_26 = arith.constant 2 : index
    %c0_27 = arith.constant 0 : index
    %c0_28 = arith.constant 0 : index
    %29 = vector.load %arg6[%c2_26, %c0_27, %c0_28] : memref<3x128x128xf32, #tpu.memory_space<vmem>>, vector<1x128x128xf32>
    %30 = vector.shape_cast %29 : vector<1x128x128xf32> to vector<128x128xf32>
    %cst_29 = arith.constant dense<0.000000e+00> : vector<32x128xf32>
    %31 = tpu.matmul %24, %30, %cst_29 {dimension_numbers = #tpu.dot_dimension_numbers<[1], [0], [0], [1], [0, 0, 1, 1], [], []>} : vector<32x128xf32>, vector<128x128xf32>, vector<32x128xf32> -> vector<32x128xf32>
    %32 = arith.addf %28, %31 : vector<32x128xf32>
    %c0_30 = arith.constant 0 : index
    %c0_31 = arith.constant 0 : index
    %c0_32 = arith.constant 0 : index
    %33 = vector.load %arg6[%c0_30, %c0_31, %c0_32] : memref<3x128x128xf32, #tpu.memory_space<vmem>>, vector<1x128x128xf32>
    %34 = vector.shape_cast %33 : vector<1x128x128xf32> to vector<128x128xf32>
    %cst_33 = arith.constant dense<0.000000e+00> : vector<32x128xf32>
    %35 = tpu.matmul %25, %34, %cst_33 {dimension_numbers = #tpu.dot_dimension_numbers<[1], [0], [0], [1], [0, 0, 1, 1], [], []>} : vector<32x128xf32>, vector<128x128xf32>, vector<32x128xf32> -> vector<32x128xf32>
    %36 = arith.addf %32, %35 : vector<32x128xf32>
    %c0_34 = arith.constant 0 : index
    %c0_35 = arith.constant 0 : index
    %37 = vector.load %arg7[%c0_34, %c0_35] : memref<1x128xf32, #tpu.memory_space<vmem>>, vector<1x128xf32>
    %38 = vector.broadcast %37 : vector<1x128xf32> to vector<32x128xf32>
    %39 = arith.addf %36, %38 : vector<32x128xf32>
    %cst_36 = arith.constant 0.000000e+00 : f32
    %40 = vector.broadcast %cst_36 : f32 to vector<32x128xf32>
    %41 = arith.cmpf ogt, %39, %40 : vector<32x128xf32>
    %cst_37 = arith.constant 1.000000e-01 : f32
    %42 = vector.broadcast %cst_37 : f32 to vector<32x128xf32>
    %43 = arith.mulf %42, %39 : vector<32x128xf32>
    %44 = arith.select %41, %39, %43 : vector<32x128xi1>, vector<32x128xf32>
    %cst_38 = arith.constant dense<0.000000e+00> : vector<32x128xf32>
    %45 = tpu.matmul %1, %44, %cst_38 {dimension_numbers = #tpu.dot_dimension_numbers<[1], [0], [0], [1], [0, 0, 1, 1], [], []>} : vector<32x32xf32>, vector<32x128xf32>, vector<32x128xf32> -> vector<32x128xf32>
    %cst_39 = arith.constant dense<0.000000e+00> : vector<32x128xf32>
    %46 = tpu.matmul %2, %44, %cst_39 {dimension_numbers = #tpu.dot_dimension_numbers<[1], [0], [0], [1], [0, 0, 1, 1], [], []>} : vector<32x32xf32>, vector<32x128xf32>, vector<32x128xf32> -> vector<32x128xf32>
    %c1_40 = arith.constant 1 : index
    %c0_41 = arith.constant 0 : index
    %c0_42 = arith.constant 0 : index
    %47 = vector.load %arg8[%c1_40, %c0_41, %c0_42] : memref<3x128x64xf32, #tpu.memory_space<vmem>>, vector<1x128x64xf32>
    %48 = vector.shape_cast %47 : vector<1x128x64xf32> to vector<128x64xf32>
    %cst_43 = arith.constant dense<0.000000e+00> : vector<32x64xf32>
    %49 = tpu.matmul %44, %48, %cst_43 {dimension_numbers = #tpu.dot_dimension_numbers<[1], [0], [0], [1], [0, 0, 1, 1], [], []>} : vector<32x128xf32>, vector<128x64xf32>, vector<32x64xf32> -> vector<32x64xf32>
    %c2_44 = arith.constant 2 : index
    %c0_45 = arith.constant 0 : index
    %c0_46 = arith.constant 0 : index
    %50 = vector.load %arg8[%c2_44, %c0_45, %c0_46] : memref<3x128x64xf32, #tpu.memory_space<vmem>>, vector<1x128x64xf32>
    %51 = vector.shape_cast %50 : vector<1x128x64xf32> to vector<128x64xf32>
    %cst_47 = arith.constant dense<0.000000e+00> : vector<32x64xf32>
    %52 = tpu.matmul %45, %51, %cst_47 {dimension_numbers = #tpu.dot_dimension_numbers<[1], [0], [0], [1], [0, 0, 1, 1], [], []>} : vector<32x128xf32>, vector<128x64xf32>, vector<32x64xf32> -> vector<32x64xf32>
    %53 = arith.addf %49, %52 : vector<32x64xf32>
    %c0_48 = arith.constant 0 : index
    %c0_49 = arith.constant 0 : index
    %c0_50 = arith.constant 0 : index
    %54 = vector.load %arg8[%c0_48, %c0_49, %c0_50] : memref<3x128x64xf32, #tpu.memory_space<vmem>>, vector<1x128x64xf32>
    %55 = vector.shape_cast %54 : vector<1x128x64xf32> to vector<128x64xf32>
    %cst_51 = arith.constant dense<0.000000e+00> : vector<32x64xf32>
    %56 = tpu.matmul %46, %55, %cst_51 {dimension_numbers = #tpu.dot_dimension_numbers<[1], [0], [0], [1], [0, 0, 1, 1], [], []>} : vector<32x128xf32>, vector<128x64xf32>, vector<32x64xf32> -> vector<32x64xf32>
    %57 = arith.addf %53, %56 : vector<32x64xf32>
    %c0_52 = arith.constant 0 : index
    %c0_53 = arith.constant 0 : index
    %58 = vector.load %arg9[%c0_52, %c0_53] : memref<1x64xf32, #tpu.memory_space<vmem>>, vector<1x64xf32>
    %59 = vector.broadcast %58 : vector<1x64xf32> to vector<32x64xf32>
    %60 = arith.addf %57, %59 : vector<32x64xf32>
    %cst_54 = arith.constant 0.000000e+00 : f32
    %61 = vector.broadcast %cst_54 : f32 to vector<32x64xf32>
    %62 = arith.cmpf ogt, %60, %61 : vector<32x64xf32>
    %cst_55 = arith.constant 1.000000e-01 : f32
    %63 = vector.broadcast %cst_55 : f32 to vector<32x64xf32>
    %64 = arith.mulf %63, %60 : vector<32x64xf32>
    %65 = arith.select %62, %60, %64 : vector<32x64xi1>, vector<32x64xf32>
    %66 = arith.negf %65 : vector<32x64xf32>
    %67 = math.exp %66 : vector<32x64xf32>
    %cst_56 = arith.constant 1.000000e+00 : f32
    %68 = vector.broadcast %cst_56 : f32 to vector<32x64xf32>
    %69 = arith.addf %68, %67 : vector<32x64xf32>
    %70 = arith.divf %68, %69 : vector<32x64xf32>
    %c0_57 = arith.constant 0 : index
    %c0_58 = arith.constant 0 : index
    %71 = vector.load %arg10[%c0_57, %c0_58] : memref<32x64xf32, #tpu.memory_space<vmem>>, vector<32x64xf32>
    tpu.vector_store %arg10[%c0_57, %c0_58], %70 {strides = array<i32>} : memref<32x64xf32, #tpu.memory_space<vmem>>, vector<32x64xf32>,
    %c0_59 = arith.constant 0 : index
    %c0_60 = arith.constant 0 : index
    %72 = vector.load %arg1[%c0_59, %c0_60] : memref<32x64xf32, #tpu.memory_space<vmem>>, vector<32x64xf32>
    %73 = arith.subf %70, %72 : vector<32x64xf32>
    %74 = arith.mulf %73, %73 : vector<32x64xf32>
    %75 = vector.shape_cast %74 : vector<32x64xf32> to vector<1x32x64xf32>
    %cst_61 = arith.constant dense<0.000000e+00> : vector<1xf32>
    %76 = vector.multi_reduction <add>, %75, %cst_61 [1, 2] : vector<1x32x64xf32> to vector<1xf32>
    %77 = vector.shape_cast %76 : vector<1xf32> to vector<1x1x1xf32>
    %78 = vector.extract %77[0, 0, 0] : f32 from vector<1x1x1xf32>
    %cst_62 = arith.constant 4.8828125E-4 : f32
    %79 = arith.mulf %78, %cst_62 : f32
    %c0_63 = arith.constant 0 : index
    %c0_64 = arith.constant 0 : index
    %80 = memref.load %arg11[%c0_63, %c0_64] : memref<1x1xf32, #tpu.memory_space<smem>>
    memref.store %79, %arg11[%c0_63, %c0_64] : memref<1x1xf32, #tpu.memory_space<smem>>
    return
  }
}

</mosaic_0001>

<llo_original>
// kernel: cnn_forward.1
$region0: #{cnn_forward.1}
  #allocation0 [shape = 'u32[]', space=smem, size = 0x4, offset = 0x4, fixed_abs, tag = 'smem constant byte address 0x4 - core index']
  #allocation1 [shape = 'u32[72,128]{1,0:T(1,128)}', space=vmem, size = 0x9000, scoped, tag = 'internal scratch']
  %s0 = inlined_call_operand.vmem [shape: f32[32,64], index: 0, kind: input, shape index: {}, may-alias: {0,1}]
  %s1 = inlined_call_operand.vmem [shape: f32[32,64], index: 1, kind: input, shape index: {}, may-alias: {0,1}]
  %s2 = inlined_call_operand.vmem [shape: f32[32,32], index: 2, kind: input, shape index: {}]
  %s3 = inlined_call_operand.vmem [shape: f32[32,32], index: 3, kind: input, shape index: {}]
  %s4 = inlined_call_operand.vmem [shape: f32[3,64,128], index: 4, kind: input, shape index: {}]
  %s5 = inlined_call_operand.vmem [shape: f32[1,128], index: 5, kind: input, shape index: {}]
  %s6 = inlined_call_operand.vmem [shape: f32[3,128,128], index: 6, kind: input, shape index: {}]
  %s7 = inlined_call_operand.vmem [shape: f32[1,128], index: 7, kind: input, shape index: {}]
  %s8 = inlined_call_operand.vmem [shape: f32[3,128,64], index: 8, kind: input, shape index: {}]
  %s9 = inlined_call_operand.vmem [shape: f32[1,64], index: 9, kind: input, shape index: {}]
  %s10 = inlined_call_operand.vmem [shape: f32[32,64], index: 10, kind: output, shape index: {0}]
  %s11 = inlined_call_operand.hbm [shape: f32[1,1], index: 11, kind: output, shape index: {1}]
  %12 = xla_tuple %s10, %s11
  %s13 = sld [smem:[#allocation0]]
  $region58: #{cnn_forward.1} parent=0
    _
  %s15 = ssub.s32 1, %s13
  %s16 = scalar_select 0, %s15, %s13
  $region1: #{cnn_forward.1} parent=0
    #allocation2 [shape = 'u8[512]{0}', space=smem, size = 0x200, scoped, tag = 'output window, operand 1, single buffered']
    #allocation3 [shape = 's32[1]{0}', space=sflag, size = 0x4, scoped, tag = 'scoped memory for cnn_forward.1']
    %17 = vsyncpa [#allocation3], 0
    // Predicated region
    $region2: #{cnn_forward.1} parent=1 // pred_check
      _
    $region3: #{cnn_forward.1} parent=1 // pred_check_branch
      %19 = sbr.rel (0) target = $region5
    $region4: #{cnn_forward.1} parent=1 // pred_region
      _
    $region5: #{cnn_forward.1} parent=1 // pred_fallthru
      _
    // Predicated region
    $region6: #{cnn_forward.1} parent=1 // pred_check
      _
    $region7: #{cnn_forward.1} parent=1 // pred_check_branch
      %21 = sbr.rel (0) target = $region9
    $region8: #{cnn_forward.1} parent=1 // pred_region
      _
    $region9: #{cnn_forward.1} parent=1 // pred_fallthru
      _
    // Predicated region
    $region10: #{cnn_forward.1} parent=1 // pred_check
      _
    $region11: #{cnn_forward.1} parent=1 // pred_check_branch
      %23 = sbr.rel (0) target = $region13
    $region12: #{cnn_forward.1} parent=1 // pred_region
      _
    $region13: #{cnn_forward.1} parent=1 // pred_fallthru
      _
    // Predicated region
    $region14: #{cnn_forward.1} parent=1 // pred_check
      _
    $region15: #{cnn_forward.1} parent=1 // pred_check_branch
      %25 = sbr.rel (0) target = $region17
    $region16: #{cnn_forward.1} parent=1 // pred_region
      _
    $region17: #{cnn_forward.1} parent=1 // pred_fallthru
      _
    // Predicated region
    $region18: #{cnn_forward.1} parent=1 // pred_check
      _
    $region19: #{cnn_forward.1} parent=1 // pred_check_branch
      %27 = sbr.rel (0) target = $region21
    $region20: #{cnn_forward.1} parent=1 // pred_region
      _
    $region21: #{cnn_forward.1} parent=1 // pred_fallthru
      _
    // Predicated region
    $region22: #{cnn_forward.1} parent=1 // pred_check
      _
    $region23: #{cnn_forward.1} parent=1 // pred_check_branch
      %29 = sbr.rel (0) target = $region25
    $region24: #{cnn_forward.1} parent=1 // pred_region
      _
    $region25: #{cnn_forward.1} parent=1 // pred_fallthru
      _
    // Predicated region
    $region26: #{cnn_forward.1} parent=1 // pred_check
      _
    $region27: #{cnn_forward.1} parent=1 // pred_check_branch
      %31 = sbr.rel (0) target = $region29
    $region28: #{cnn_forward.1} parent=1 // pred_region
      _
    $region29: #{cnn_forward.1} parent=1 // pred_fallthru
      _
    // Predicated region
    $region30: #{cnn_forward.1} parent=1 // pred_check
      _
    $region31: #{cnn_forward.1} parent=1 // pred_check_branch
      %33 = sbr.rel (0) target = $region33
    $region32: #{cnn_forward.1} parent=1 // pred_region
      _
    $region33: #{cnn_forward.1} parent=1 // pred_fallthru
      _
    // Predicated region
    $region34: #{cnn_forward.1} parent=1 // pred_check
      _
    $region35: #{cnn_forward.1} parent=1 // pred_check_branch
      %35 = sbr.rel (0) target = $region37
    $region36: #{cnn_forward.1} parent=1 // pred_region
      _
    $region37: #{cnn_forward.1} parent=1 // pred_fallthru
      _
    // Predicated region
    $region38: #{cnn_forward.1} parent=1 // pred_check
      _
    $region39: #{cnn_forward.1} parent=1 // pred_check_branch
      %37 = sbr.rel (0) target = $region41
    $region40: #{cnn_forward.1} parent=1 // pred_region
      _
    $region41: #{cnn_forward.1} parent=1 // pred_fallthru
      _
    %v38 = vld [vmem:[%s0] sm:$0xff]
    %v39 = vld [vmem:[%s0 + $0x8] sm:$0xff]
    %v40 = vld [vmem:[%s0 + $0x10] sm:$0xff]
    %v41 = vld [vmem:[%s0 + $0x18] sm:$0xff]
    %v42 = vld [vmem:[%s2] sm:$0xff]
    %v43 = vld [vmem:[%s2 + $0x8] sm:$0xff]
    %v44 = vld [vmem:[%s2 + $0x10] sm:$0xff]
    %v45 = vld [vmem:[%s2 + $0x18] sm:$0xff]
    %v46 = vld [vmem:[%s3] sm:$0xff]
    %v47 = vld [vmem:[%s3 + $0x8] sm:$0xff]
    %v48 = vld [vmem:[%s3 + $0x10] sm:$0xff]
    %v49 = vld [vmem:[%s3 + $0x18] sm:$0xff]
    %vm50 = vcmask 261120
    %v52 = vsel %vm50, %v42, 0
    %v55 = vsel %vm50, %v43, 0
    %v58 = vsel %vm50, %v44, 0
    %v61 = vsel %vm50, %v45, 0
    %63 = vmatpush.msra.mxu0 0.0
    %64 = vmatpush.msra.mxu0 0.0
    %65 = vmatpush.msra.mxu0 0.0
    %66 = vmatpush.msra.mxu0 0.0
    %67 = vmatpush.msra.mxu0 0.0
    %68 = vmatpush.msra.mxu0 0.0
    %69 = vmatpush.msra.mxu0 0.0
    %70 = vmatpush.msra.mxu0 0.0
    %71 = vmatpush.msra.mxu0 0.0
    %72 = vmatpush.msra.mxu0 0.0
    %73 = vmatpush.msra.mxu0 0.0
    %74 = vmatpush.msra.mxu0 0.0
    %75 = vmatpush.msra.mxu0 %v41
    %76 = vmatpush.msra.mxu0 %v40
    %77 = vmatpush.msra.mxu0 %v39
    %78 = vmatpush.msra.mxu0 %v38
    %79 = vmatmul.f32.gmra.mxu0 %v52
    %v80 = vpop.f32.mrf.mxu0
    %v81 = vadd.f32 0.0, %v80
    %82 = vmatmul.f32.gmra.mxu0 %v55
    %v83 = vpop.f32.mrf.mxu0
    %v84 = vadd.f32 0.0, %v83
    %85 = vmatmul.f32.gmra.mxu0 %v58
    %v86 = vpop.f32.mrf.mxu0
    %v87 = vadd.f32 0.0, %v86
    %88 = vmatmul.f32.gmra.mxu0 %v61
    %v89 = vpop.f32.mrf.mxu0
    %v90 = vadd.f32 0.0, %v89
    %91 = vdwg.mxu0
    %v93 = vsel %vm50, %v46, 0
    %v96 = vsel %vm50, %v47, 0
    %v99 = vsel %vm50, %v48, 0
    %v102 = vsel %vm50, %v49, 0
    %104 = vmatpush.msra.mxu0 0.0
    %105 = vmatpush.msra.mxu0 0.0
    %106 = vmatpush.msra.mxu0 0.0
    %107 = vmatpush.msra.mxu0 0.0
    %108 = vmatpush.msra.mxu0 0.0
    %109 = vmatpush.msra.mxu0 0.0
    %110 = vmatpush.msra.mxu0 0.0
    %111 = vmatpush.msra.mxu0 0.0
    %112 = vmatpush.msra.mxu0 0.0
    %113 = vmatpush.msra.mxu0 0.0
    %114 = vmatpush.msra.mxu0 0.0
    %115 = vmatpush.msra.mxu0 0.0
    %116 = vmatpush.msra.mxu0 %v41
    %117 = vmatpush.msra.mxu0 %v40
    %118 = vmatpush.msra.mxu0 %v39
    %119 = vmatpush.msra.mxu0 %v38
    %120 = vmatmul.f32.gmra.mxu0 %v93
    %v121 = vpop.f32.mrf.mxu0
    %v122 = vadd.f32 0.0, %v121
    %123 = vmatmul.f32.gmra.mxu0 %v96
    %v124 = vpop.f32.mrf.mxu0
    %v125 = vadd.f32 0.0, %v124
    %126 = vmatmul.f32.gmra.mxu0 %v99
    %v127 = vpop.f32.mrf.mxu0
    %v128 = vadd.f32 0.0, %v127
    %129 = vmatmul.f32.gmra.mxu0 %v102
    %v130 = vpop.f32.mrf.mxu0
    %v131 = vadd.f32 0.0, %v130
    %132 = vdwg.mxu0
    %s133 = scalar_lea.vmem %s4, 64
    %v134 = vld [vmem:[%s133] sm:$0xff]
    %v135 = vld [vmem:[%s133 + $0x8] sm:$0xff]
    %v136 = vld [vmem:[%s133 + $0x10] sm:$0xff]
    %v137 = vld [vmem:[%s133 + $0x18] sm:$0xff]
    %v138 = vld [vmem:[%s133 + $0x20] sm:$0xff]
    %v139 = vld [vmem:[%s133 + $0x28] sm:$0xff]
    %v140 = vld [vmem:[%s133 + $0x30] sm:$0xff]
    %v141 = vld [vmem:[%s133 + $0x38] sm:$0xff]
    %s142 = scalar_lea.vmem %s4, 128
    %v143 = vld [vmem:[%s142] sm:$0xff]
    %v144 = vld [vmem:[%s142 + $0x8] sm:$0xff]
    %v145 = vld [vmem:[%s142 + $0x10] sm:$0xff]
    %v146 = vld [vmem:[%s142 + $0x18] sm:$0xff]
    %v147 = vld [vmem:[%s142 + $0x20] sm:$0xff]
    %v148 = vld [vmem:[%s142 + $0x28] sm:$0xff]
    %v149 = vld [vmem:[%s142 + $0x30] sm:$0xff]
    %v150 = vld [vmem:[%s142 + $0x38] sm:$0xff]
    %vm151 = vcmask 523264
    %v153 = vsel %vm151, %v81, 0
    %v156 = vsel %vm151, %v84, 0
    %v159 = vsel %vm151, %v87, 0
    %v162 = vsel %vm151, %v90, 0
    %164 = vmatpush.msra.mxu0 0.0
    %165 = vmatpush.msra.mxu0 0.0
    %166 = vmatpush.msra.mxu0 0.0
    %167 = vmatpush.msra.mxu0 0.0
    %168 = vmatpush.msra.mxu0 0.0
    %169 = vmatpush.msra.mxu0 0.0
    %170 = vmatpush.msra.mxu0 0.0
    %171 = vmatpush.msra.mxu0 0.0
    %172 = vmatpush.msra.mxu0 %v150
    %173 = vmatpush.msra.mxu0 %v149
    %174 = vmatpush.msra.mxu0 %v148
    %175 = vmatpush.msra.mxu0 %v147
    %176 = vmatpush.msra.mxu0 %v146
    %177 = vmatpush.msra.mxu0 %v145
    %178 = vmatpush.msra.mxu0 %v144
    %179 = vmatpush.msra.mxu0 %v143
    %180 = vmatmul.f32.gmra.mxu0 %v153
    %v181 = vpop.f32.mrf.mxu0
    %v182 = vadd.f32 0.0, %v181
    %183 = vmatmul.f32.gmra.mxu0 %v156
    %v184 = vpop.f32.mrf.mxu0
    %v185 = vadd.f32 0.0, %v184
    %186 = vmatmul.f32.gmra.mxu0 %v159
    %v187 = vpop.f32.mrf.mxu0
    %v188 = vadd.f32 0.0, %v187
    %189 = vmatmul.f32.gmra.mxu0 %v162
    %v190 = vpop.f32.mrf.mxu0
    %v191 = vadd.f32 0.0, %v190
    %192 = vdwg.mxu0
    %v194 = vsel %vm151, %v38, 0
    %v197 = vsel %vm151, %v39, 0
    %v200 = vsel %vm151, %v40, 0
    %v203 = vsel %vm151, %v41, 0
    %205 = vmatpush.msra.mxu0 0.0
    %206 = vmatpush.msra.mxu0 0.0
    %207 = vmatpush.msra.mxu0 0.0
    %208 = vmatpush.msra.mxu0 0.0
    %209 = vmatpush.msra.mxu0 0.0
    %210 = vmatpush.msra.mxu0 0.0
    %211 = vmatpush.msra.mxu0 0.0
    %212 = vmatpush.msra.mxu0 0.0
    %213 = vmatpush.msra.mxu0 %v141
    %214 = vmatpush.msra.mxu0 %v140
    %215 = vmatpush.msra.mxu0 %v139
    %216 = vmatpush.msra.mxu0 %v138
    %217 = vmatpush.msra.mxu0 %v137
    %218 = vmatpush.msra.mxu0 %v136
    %219 = vmatpush.msra.mxu0 %v135
    %220 = vmatpush.msra.mxu0 %v134
    %221 = vmatmul.f32.gmra.mxu0 %v194
    %v222 = vpop.f32.mrf.mxu0
    %v223 = vadd.f32 %v182, %v222
    %224 = vmatmul.f32.gmra.mxu0 %v197
    %v225 = vpop.f32.mrf.mxu0
    %v226 = vadd.f32 %v185, %v225
    %227 = vmatmul.f32.gmra.mxu0 %v200
    %v228 = vpop.f32.mrf.mxu0
    %v229 = vadd.f32 %v188, %v228
    %230 = vmatmul.f32.gmra.mxu0 %v203
    %v231 = vpop.f32.mrf.mxu0
    %v232 = vadd.f32 %v191, %v231
    %233 = vdwg.mxu0
    %v234 = vld [vmem:[%s4] sm:$0xff]
    %v235 = vld [vmem:[%s4 + $0x8] sm:$0xff]
    %v236 = vld [vmem:[%s4 + $0x10] sm:$0xff]
    %v237 = vld [vmem:[%s4 + $0x18] sm:$0xff]
    %v238 = vld [vmem:[%s4 + $0x20] sm:$0xff]
    %v239 = vld [vmem:[%s4 + $0x28] sm:$0xff]
    %v240 = vld [vmem:[%s4 + $0x30] sm:$0xff]
    %v241 = vld [vmem:[%s4 + $0x38] sm:$0xff]
    %v243 = vsel %vm151, %v122, 0
    %v246 = vsel %vm151, %v125, 0
    %v249 = vsel %vm151, %v128, 0
    %v252 = vsel %vm151, %v131, 0
    %254 = vmatpush.msra.mxu0 0.0
    %255 = vmatpush.msra.mxu0 0.0
    %256 = vmatpush.msra.mxu0 0.0
    %257 = vmatpush.msra.mxu0 0.0
    %258 = vmatpush.msra.mxu0 0.0
    %259 = vmatpush.msra.mxu0 0.0
    %260 = vmatpush.msra.mxu0 0.0
    %261 = vmatpush.msra.mxu0 0.0
    %262 = vmatpush.msra.mxu0 %v241
    %263 = vmatpush.msra.mxu0 %v240
    %264 = vmatpush.msra.mxu0 %v239
    %265 = vmatpush.msra.mxu0 %v238
    %266 = vmatpush.msra.mxu0 %v237
    %267 = vmatpush.msra.mxu0 %v236
    %268 = vmatpush.msra.mxu0 %v235
    %269 = vmatpush.msra.mxu0 %v234
    %270 = vmatmul.f32.gmra.mxu0 %v243
    %v271 = vpop.f32.mrf.mxu0
    %v272 = vadd.f32 0.0, %v271
    %273 = vmatmul.f32.gmra.mxu0 %v246
    %v274 = vpop.f32.mrf.mxu0
    %v275 = vadd.f32 0.0, %v274
    %276 = vmatmul.f32.gmra.mxu0 %v249
    %v277 = vpop.f32.mrf.mxu0
    %v278 = vadd.f32 0.0, %v277
    %279 = vmatmul.f32.gmra.mxu0 %v252
    %v280 = vpop.f32.mrf.mxu0
    %v281 = vadd.f32 0.0, %v280
    %282 = vdwg.mxu0
    %v283 = vadd.f32 %v223, %v272
    %v284 = vadd.f32 %v226, %v275
    %v285 = vadd.f32 %v229, %v278
    %v286 = vadd.f32 %v232, %v281
    %v287 = vld [vmem:[%s5] sm:$0x1]
    %v289 = vperm.slane %v287, 0
    %v291 = vadd.f32 %v283, %v289
    %v292 = vadd.f32 %v284, %v289
    %v293 = vadd.f32 %v285, %v289
    %v294 = vadd.f32 %v286, %v289
    %vm295 = vcmp.gt.f32.partialorder %v291, 0.0
    %vm296 = vcmp.gt.f32.partialorder %v292, 0.0
    %vm297 = vcmp.gt.f32.partialorder %v293, 0.0
    %vm298 = vcmp.gt.f32.partialorder %v294, 0.0
    %v299 = vmul.f32 %v291, 0.1
    %v300 = vmul.f32 %v292, 0.1
    %v301 = vmul.f32 %v293, 0.1
    %v302 = vmul.f32 %v294, 0.1
    %v303 = vsel %vm295, %v291, %v299
    %v304 = vsel %vm296, %v292, %v300
    %v305 = vsel %vm297, %v293, %v301
    %v306 = vsel %vm298, %v294, %v302
    %307 = vmatpush.msra.mxu0 0.0
    %308 = vmatpush.msra.mxu0 0.0
    %309 = vmatpush.msra.mxu0 0.0
    %310 = vmatpush.msra.mxu0 0.0
    %311 = vmatpush.msra.mxu0 0.0
    %312 = vmatpush.msra.mxu0 0.0
    %313 = vmatpush.msra.mxu0 0.0
    %314 = vmatpush.msra.mxu0 0.0
    %315 = vmatpush.msra.mxu0 0.0
    %316 = vmatpush.msra.mxu0 0.0
    %317 = vmatpush.msra.mxu0 0.0
    %318 = vmatpush.msra.mxu0 0.0
    %319 = vmatpush.msra.mxu0 %v306
    %320 = vmatpush.msra.mxu0 %v305
    %321 = vmatpush.msra.mxu0 %v304
    %322 = vmatpush.msra.mxu0 %v303
    %323 = vmatmul.f32.gmra.mxu0 %v52
    %v324 = vpop.f32.mrf.mxu0
    %v325 = vadd.f32 0.0, %v324
    %326 = vmatmul.f32.gmra.mxu0 %v55
    %v327 = vpop.f32.mrf.mxu0
    %v328 = vadd.f32 0.0, %v327
    %329 = vmatmul.f32.gmra.mxu0 %v58
    %v330 = vpop.f32.mrf.mxu0
    %v331 = vadd.f32 0.0, %v330
    %332 = vmatmul.f32.gmra.mxu0 %v61
    %v333 = vpop.f32.mrf.mxu0
    %v334 = vadd.f32 0.0, %v333
    %335 = vdwg.mxu0
    %336 = vmatpush.msra.mxu0 0.0
    %337 = vmatpush.msra.mxu0 0.0
    %338 = vmatpush.msra.mxu0 0.0
    %339 = vmatpush.msra.mxu0 0.0
    %340 = vmatpush.msra.mxu0 0.0
    %341 = vmatpush.msra.mxu0 0.0
    %342 = vmatpush.msra.mxu0 0.0
    %343 = vmatpush.msra.mxu0 0.0
    %344 = vmatpush.msra.mxu0 0.0
    %345 = vmatpush.msra.mxu0 0.0
    %346 = vmatpush.msra.mxu0 0.0
    %347 = vmatpush.msra.mxu0 0.0
    %348 = vmatpush.msra.mxu0 %v306
    %349 = vmatpush.msra.mxu0 %v305
    %350 = vmatpush.msra.mxu0 %v304
    %351 = vmatpush.msra.mxu0 %v303
    %352 = vmatmul.f32.gmra.mxu0 %v93
    %v353 = vpop.f32.mrf.mxu0
    %v354 = vadd.f32 0.0, %v353
    %355 = vmatmul.f32.gmra.mxu0 %v96
    %v356 = vpop.f32.mrf.mxu0
    %v357 = vadd.f32 0.0, %v356
    %358 = vmatmul.f32.gmra.mxu0 %v99
    %v359 = vpop.f32.mrf.mxu0
    %v360 = vadd.f32 0.0, %v359
    %361 = vmatmul.f32.gmra.mxu0 %v102
    %v362 = vpop.f32.mrf.mxu0
    %v363 = vadd.f32 0.0, %v362
    %364 = vdwg.mxu0
    %s365 = scalar_lea.vmem %s6, 128
    %v366 = vld [vmem:[%s365] sm:$0xff]
    %v367 = vld [vmem:[%s365 + $0x8] sm:$0xff]
    %v368 = vld [vmem:[%s365 + $0x10] sm:$0xff]
    %v369 = vld [vmem:[%s365 + $0x18] sm:$0xff]
    %v370 = vld [vmem:[%s365 + $0x20] sm:$0xff]
    %v371 = vld [vmem:[%s365 + $0x28] sm:$0xff]
    %v372 = vld [vmem:[%s365 + $0x30] sm:$0xff]
    %v373 = vld [vmem:[%s365 + $0x38] sm:$0xff]
    %v374 = vld [vmem:[%s365 + $0x40] sm:$0xff]
    %v375 = vld [vmem:[%s365 + $0x48] sm:$0xff]
    %v376 = vld [vmem:[%s365 + $0x50] sm:$0xff]
    %v377 = vld [vmem:[%s365 + $0x58] sm:$0xff]
    %v378 = vld [vmem:[%s365 + $0x60] sm:$0xff]
    %v379 = vld [vmem:[%s365 + $0x68] sm:$0xff]
    %v380 = vld [vmem:[%s365 + $0x70] sm:$0xff]
    %v381 = vld [vmem:[%s365 + $0x78] sm:$0xff]
    %s382 = scalar_lea.vmem %s6, 256
    %v383 = vld [vmem:[%s382] sm:$0xff]
    %v384 = vld [vmem:[%s382 + $0x8] sm:$0xff]
    %v385 = vld [vmem:[%s382 + $0x10] sm:$0xff]
    %v386 = vld [vmem:[%s382 + $0x18] sm:$0xff]
    %v387 = vld [vmem:[%s382 + $0x20] sm:$0xff]
    %v388 = vld [vmem:[%s382 + $0x28] sm:$0xff]
    %v389 = vld [vmem:[%s382 + $0x30] sm:$0xff]
    %v390 = vld [vmem:[%s382 + $0x38] sm:$0xff]
    %v391 = vld [vmem:[%s382 + $0x40] sm:$0xff]
    %v392 = vld [vmem:[%s382 + $0x48] sm:$0xff]
    %v393 = vld [vmem:[%s382 + $0x50] sm:$0xff]
    %v394 = vld [vmem:[%s382 + $0x58] sm:$0xff]
    %v395 = vld [vmem:[%s382 + $0x60] sm:$0xff]
    %v396 = vld [vmem:[%s382 + $0x68] sm:$0xff]
    %v397 = vld [vmem:[%s382 + $0x70] sm:$0xff]
    %v398 = vld [vmem:[%s382 + $0x78] sm:$0xff]
    %399 = vmatpush.msra.mxu0 %v398
    %400 = vmatpush.msra.mxu0 %v397
    %401 = vmatpush.msra.mxu0 %v396
    %402 = vmatpush.msra.mxu0 %v395
    %403 = vmatpush.msra.mxu0 %v394
    %404 = vmatpush.msra.mxu0 %v393
    %405 = vmatpush.msra.mxu0 %v392
    %406 = vmatpush.msra.mxu0 %v391
    %407 = vmatpush.msra.mxu0 %v390
    %408 = vmatpush.msra.mxu0 %v389
    %409 = vmatpush.msra.mxu0 %v388
    %410 = vmatpush.msra.mxu0 %v387
    %411 = vmatpush.msra.mxu0 %v386
    %412 = vmatpush.msra.mxu0 %v385
    %413 = vmatpush.msra.mxu0 %v384
    %414 = vmatpush.msra.mxu0 %v383
    %415 = vmatmul.f32.gmra.mxu0 %v325
    %v416 = vpop.f32.mrf.mxu0
    %v417 = vadd.f32 0.0, %v416
    %418 = vmatmul.f32.gmra.mxu0 %v328
    %v419 = vpop.f32.mrf.mxu0
    %v420 = vadd.f32 0.0, %v419
    %421 = vmatmul.f32.gmra.mxu0 %v331
    %v422 = vpop.f32.mrf.mxu0
    %v423 = vadd.f32 0.0, %v422
    %424 = vmatmul.f32.gmra.mxu0 %v334
    %v425 = vpop.f32.mrf.mxu0
    %v426 = vadd.f32 0.0, %v425
    %427 = vdwg.mxu0
    %428 = vmatpush.msra.mxu0 %v381
    %429 = vmatpush.msra.mxu0 %v380
    %430 = vmatpush.msra.mxu0 %v379
    %431 = vmatpush.msra.mxu0 %v378
    %432 = vmatpush.msra.mxu0 %v377
    %433 = vmatpush.msra.mxu0 %v376
    %434 = vmatpush.msra.mxu0 %v375
    %435 = vmatpush.msra.mxu0 %v374
    %436 = vmatpush.msra.mxu0 %v373
    %437 = vmatpush.msra.mxu0 %v372
    %438 = vmatpush.msra.mxu0 %v371
    %439 = vmatpush.msra.mxu0 %v370
    %440 = vmatpush.msra.mxu0 %v369
    %441 = vmatpush.msra.mxu0 %v368
    %442 = vmatpush.msra.mxu0 %v367
    %443 = vmatpush.msra.mxu0 %v366
    %444 = vmatmul.f32.gmra.mxu0 %v303
    %v445 = vpop.f32.mrf.mxu0
    %v446 = vadd.f32 %v417, %v445
    %447 = vmatmul.f32.gmra.mxu0 %v304
    %v448 = vpop.f32.mrf.mxu0
    %v449 = vadd.f32 %v420, %v448
    %450 = vmatmul.f32.gmra.mxu0 %v305
    %v451 = vpop.f32.mrf.mxu0
    %v452 = vadd.f32 %v423, %v451
    %453 = vmatmul.f32.gmra.mxu0 %v306
    %v454 = vpop.f32.mrf.mxu0
    %v455 = vadd.f32 %v426, %v454
    %456 = vdwg.mxu0
    %v457 = vld [vmem:[%s6] sm:$0xff]
    %v458 = vld [vmem:[%s6 + $0x8] sm:$0xff]
    %v459 = vld [vmem:[%s6 + $0x10] sm:$0xff]
    %v460 = vld [vmem:[%s6 + $0x18] sm:$0xff]
    %v461 = vld [vmem:[%s6 + $0x20] sm:$0xff]
    %v462 = vld [vmem:[%s6 + $0x28] sm:$0xff]
    %v463 = vld [vmem:[%s6 + $0x30] sm:$0xff]
    %v464 = vld [vmem:[%s6 + $0x38] sm:$0xff]
    %v465 = vld [vmem:[%s6 + $0x40] sm:$0xff]
    %v466 = vld [vmem:[%s6 + $0x48] sm:$0xff]
    %v467 = vld [vmem:[%s6 + $0x50] sm:$0xff]
    %v468 = vld [vmem:[%s6 + $0x58] sm:$0xff]
    %v469 = vld [vmem:[%s6 + $0x60] sm:$0xff]
    %v470 = vld [vmem:[%s6 + $0x68] sm:$0xff]
    %v471 = vld [vmem:[%s6 + $0x70] sm:$0xff]
    %v472 = vld [vmem:[%s6 + $0x78] sm:$0xff]
    %473 = vmatpush.msra.mxu0 %v472
    %474 = vmatpush.msra.mxu0 %v471
    %475 = vmatpush.msra.mxu0 %v470
    %476 = vmatpush.msra.mxu0 %v469
    %477 = vmatpush.msra.mxu0 %v468
    %478 = vmatpush.msra.mxu0 %v467
    %479 = vmatpush.msra.mxu0 %v466
    %480 = vmatpush.msra.mxu0 %v465
    %481 = vmatpush.msra.mxu0 %v464
    %482 = vmatpush.msra.mxu0 %v463
    %483 = vmatpush.msra.mxu0 %v462
    %484 = vmatpush.msra.mxu0 %v461
    %485 = vmatpush.msra.mxu0 %v460
    %486 = vmatpush.msra.mxu0 %v459
    %487 = vmatpush.msra.mxu0 %v458
    %488 = vmatpush.msra.mxu0 %v457
    %489 = vmatmul.f32.gmra.mxu0 %v354
    %v490 = vpop.f32.mrf.mxu0
    %v491 = vadd.f32 0.0, %v490
    %492 = vmatmul.f32.gmra.mxu0 %v357
    %v493 = vpop.f32.mrf.mxu0
    %v494 = vadd.f32 0.0, %v493
    %495 = vmatmul.f32.gmra.mxu0 %v360
    %v496 = vpop.f32.mrf.mxu0
    %v497 = vadd.f32 0.0, %v496
    %498 = vmatmul.f32.gmra.mxu0 %v363
    %v499 = vpop.f32.mrf.mxu0
    %v500 = vadd.f32 0.0, %v499
    %501 = vdwg.mxu0
    %v502 = vadd.f32 %v446, %v491
    %v503 = vadd.f32 %v449, %v494
    %v504 = vadd.f32 %v452, %v497
    %v505 = vadd.f32 %v455, %v500
    %v506 = vld [vmem:[%s7] sm:$0x1]
    %v508 = vperm.slane %v506, 0
    %v510 = vadd.f32 %v502, %v508
    %v511 = vadd.f32 %v503, %v508
    %v512 = vadd.f32 %v504, %v508
    %v513 = vadd.f32 %v505, %v508
    %vm514 = vcmp.gt.f32.partialorder %v510, 0.0
    %vm515 = vcmp.gt.f32.partialorder %v511, 0.0
    %vm516 = vcmp.gt.f32.partialorder %v512, 0.0
    %vm517 = vcmp.gt.f32.partialorder %v513, 0.0
    %v518 = vmul.f32 %v510, 0.1
    %v519 = vmul.f32 %v511, 0.1
    %v520 = vmul.f32 %v512, 0.1
    %v521 = vmul.f32 %v513, 0.1
    %v522 = vsel %vm514, %v510, %v518
    %v523 = vsel %vm515, %v511, %v519
    %v524 = vsel %vm516, %v512, %v520
    %v525 = vsel %vm517, %v513, %v521
    %526 = vmatpush.msra.mxu0 0.0
    %527 = vmatpush.msra.mxu0 0.0
    %528 = vmatpush.msra.mxu0 0.0
    %529 = vmatpush.msra.mxu0 0.0
    %530 = vmatpush.msra.mxu0 0.0
    %531 = vmatpush.msra.mxu0 0.0
    %532 = vmatpush.msra.mxu0 0.0
    %533 = vmatpush.msra.mxu0 0.0
    %534 = vmatpush.msra.mxu0 0.0
    %535 = vmatpush.msra.mxu0 0.0
    %536 = vmatpush.msra.mxu0 0.0
    %537 = vmatpush.msra.mxu0 0.0
    %538 = vmatpush.msra.mxu0 %v525
    %539 = vmatpush.msra.mxu0 %v524
    %540 = vmatpush.msra.mxu0 %v523
    %541 = vmatpush.msra.mxu0 %v522
    %542 = vmatmul.f32.gmra.mxu0 %v52
    %v543 = vpop.f32.mrf.mxu0
    %v544 = vadd.f32 0.0, %v543
    %545 = vmatmul.f32.gmra.mxu0 %v55
    %v546 = vpop.f32.mrf.mxu0
    %v547 = vadd.f32 0.0, %v546
    %548 = vmatmul.f32.gmra.mxu0 %v58
    %v549 = vpop.f32.mrf.mxu0
    %v550 = vadd.f32 0.0, %v549
    %551 = vmatmul.f32.gmra.mxu0 %v61
    %v552 = vpop.f32.mrf.mxu0
    %v553 = vadd.f32 0.0, %v552
    %554 = vdwg.mxu0
    %555 = vmatpush.msra.mxu0 0.0
    %556 = vmatpush.msra.mxu0 0.0
    %557 = vmatpush.msra.mxu0 0.0
    %558 = vmatpush.msra.mxu0 0.0
    %559 = vmatpush.msra.mxu0 0.0
    %560 = vmatpush.msra.mxu0 0.0
    %561 = vmatpush.msra.mxu0 0.0
    %562 = vmatpush.msra.mxu0 0.0
    %563 = vmatpush.msra.mxu0 0.0
    %564 = vmatpush.msra.mxu0 0.0
    %565 = vmatpush.msra.mxu0 0.0
    %566 = vmatpush.msra.mxu0 0.0
    %567 = vmatpush.msra.mxu0 %v525
    %568 = vmatpush.msra.mxu0 %v524
    %569 = vmatpush.msra.mxu0 %v523
    %570 = vmatpush.msra.mxu0 %v522
    %571 = vmatmul.f32.gmra.mxu0 %v93
    %v572 = vpop.f32.mrf.mxu0
    %v573 = vadd.f32 0.0, %v572
    %574 = vmatmul.f32.gmra.mxu0 %v96
    %v575 = vpop.f32.mrf.mxu0
    %v576 = vadd.f32 0.0, %v575
    %577 = vmatmul.f32.gmra.mxu0 %v99
    %v578 = vpop.f32.mrf.mxu0
    %v579 = vadd.f32 0.0, %v578
    %580 = vmatmul.f32.gmra.mxu0 %v102
    %v581 = vpop.f32.mrf.mxu0
    %v582 = vadd.f32 0.0, %v581
    %583 = vdwg.mxu0
    %s584 = scalar_lea.vmem %s8, 128
    %v585 = vld [vmem:[%s584] sm:$0xff]
    %v586 = vld [vmem:[%s584 + $0x8] sm:$0xff]
    %v587 = vld [vmem:[%s584 + $0x10] sm:$0xff]
    %v588 = vld [vmem:[%s584 + $0x18] sm:$0xff]
    %v589 = vld [vmem:[%s584 + $0x20] sm:$0xff]
    %v590 = vld [vmem:[%s584 + $0x28] sm:$0xff]
    %v591 = vld [vmem:[%s584 + $0x30] sm:$0xff]
    %v592 = vld [vmem:[%s584 + $0x38] sm:$0xff]
    %v593 = vld [vmem:[%s584 + $0x40] sm:$0xff]
    %v594 = vld [vmem:[%s584 + $0x48] sm:$0xff]
    %v595 = vld [vmem:[%s584 + $0x50] sm:$0xff]
    %v596 = vld [vmem:[%s584 + $0x58] sm:$0xff]
    %v597 = vld [vmem:[%s584 + $0x60] sm:$0xff]
    %v598 = vld [vmem:[%s584 + $0x68] sm:$0xff]
    %v599 = vld [vmem:[%s584 + $0x70] sm:$0xff]
    %v600 = vld [vmem:[%s584 + $0x78] sm:$0xff]
    %s601 = scalar_lea.vmem %s8, 256
    %v602 = vld [vmem:[%s601] sm:$0xff]
    %v603 = vld [vmem:[%s601 + $0x8] sm:$0xff]
    %v604 = vld [vmem:[%s601 + $0x10] sm:$0xff]
    %v605 = vld [vmem:[%s601 + $0x18] sm:$0xff]
    %v606 = vld [vmem:[%s601 + $0x20] sm:$0xff]
    %v607 = vld [vmem:[%s601 + $0x28] sm:$0xff]
    %v608 = vld [vmem:[%s601 + $0x30] sm:$0xff]
    %v609 = vld [vmem:[%s601 + $0x38] sm:$0xff]
    %v610 = vld [vmem:[%s601 + $0x40] sm:$0xff]
    %v611 = vld [vmem:[%s601 + $0x48] sm:$0xff]
    %v612 = vld [vmem:[%s601 + $0x50] sm:$0xff]
    %v613 = vld [vmem:[%s601 + $0x58] sm:$0xff]
    %v614 = vld [vmem:[%s601 + $0x60] sm:$0xff]
    %v615 = vld [vmem:[%s601 + $0x68] sm:$0xff]
    %v616 = vld [vmem:[%s601 + $0x70] sm:$0xff]
    %v617 = vld [vmem:[%s601 + $0x78] sm:$0xff]
    %618 = vmatpush.msra.mxu0 %v617
    %619 = vmatpush.msra.mxu0 %v616
    %620 = vmatpush.msra.mxu0 %v615
    %621 = vmatpush.msra.mxu0 %v614
    %622 = vmatpush.msra.mxu0 %v613
    %623 = vmatpush.msra.mxu0 %v612
    %624 = vmatpush.msra.mxu0 %v611
    %625 = vmatpush.msra.mxu0 %v610
    %626 = vmatpush.msra.mxu0 %v609
    %627 = vmatpush.msra.mxu0 %v608
    %628 = vmatpush.msra.mxu0 %v607
    %629 = vmatpush.msra.mxu0 %v606
    %630 = vmatpush.msra.mxu0 %v605
    %631 = vmatpush.msra.mxu0 %v604
    %632 = vmatpush.msra.mxu0 %v603
    %633 = vmatpush.msra.mxu0 %v602
    %634 = vmatmul.f32.gmra.mxu0 %v544
    %v635 = vpop.f32.mrf.mxu0
    %v636 = vadd.f32 0.0, %v635
    %637 = vmatmul.f32.gmra.mxu0 %v547
    %v638 = vpop.f32.mrf.mxu0
    %v639 = vadd.f32 0.0, %v638
    %640 = vmatmul.f32.gmra.mxu0 %v550
    %v641 = vpop.f32.mrf.mxu0
    %v642 = vadd.f32 0.0, %v641
    %643 = vmatmul.f32.gmra.mxu0 %v553
    %v644 = vpop.f32.mrf.mxu0
    %v645 = vadd.f32 0.0, %v644
    %646 = vdwg.mxu0
    %647 = vmatpush.msra.mxu0 %v600
    %648 = vmatpush.msra.mxu0 %v599
    %649 = vmatpush.msra.mxu0 %v598
    %650 = vmatpush.msra.mxu0 %v597
    %651 = vmatpush.msra.mxu0 %v596
    %652 = vmatpush.msra.mxu0 %v595
    %653 = vmatpush.msra.mxu0 %v594
    %654 = vmatpush.msra.mxu0 %v593
    %655 = vmatpush.msra.mxu0 %v592
    %656 = vmatpush.msra.mxu0 %v591
    %657 = vmatpush.msra.mxu0 %v590
    %658 = vmatpush.msra.mxu0 %v589
    %659 = vmatpush.msra.mxu0 %v588
    %660 = vmatpush.msra.mxu0 %v587
    %661 = vmatpush.msra.mxu0 %v586
    %662 = vmatpush.msra.mxu0 %v585
    %663 = vmatmul.f32.gmra.mxu0 %v522
    %v664 = vpop.f32.mrf.mxu0
    %v665 = vadd.f32 %v636, %v664
    %666 = vmatmul.f32.gmra.mxu0 %v523
    %v667 = vpop.f32.mrf.mxu0
    %v668 = vadd.f32 %v639, %v667
    %669 = vmatmul.f32.gmra.mxu0 %v524
    %v670 = vpop.f32.mrf.mxu0
    %v671 = vadd.f32 %v642, %v670
    %672 = vmatmul.f32.gmra.mxu0 %v525
    %v673 = vpop.f32.mrf.mxu0
    %v674 = vadd.f32 %v645, %v673
    %675 = vdwg.mxu0
    %v676 = vld [vmem:[%s8] sm:$0xff]
    %v677 = vld [vmem:[%s8 + $0x8] sm:$0xff]
    %v678 = vld [vmem:[%s8 + $0x10] sm:$0xff]
    %v679 = vld [vmem:[%s8 + $0x18] sm:$0xff]
    %v680 = vld [vmem:[%s8 + $0x20] sm:$0xff]
    %v681 = vld [vmem:[%s8 + $0x28] sm:$0xff]
    %v682 = vld [vmem:[%s8 + $0x30] sm:$0xff]
    %v683 = vld [vmem:[%s8 + $0x38] sm:$0xff]
    %v684 = vld [vmem:[%s8 + $0x40] sm:$0xff]
    %v685 = vld [vmem:[%s8 + $0x48] sm:$0xff]
    %v686 = vld [vmem:[%s8 + $0x50] sm:$0xff]
    %v687 = vld [vmem:[%s8 + $0x58] sm:$0xff]
    %v688 = vld [vmem:[%s8 + $0x60] sm:$0xff]
    %v689 = vld [vmem:[%s8 + $0x68] sm:$0xff]
    %v690 = vld [vmem:[%s8 + $0x70] sm:$0xff]
    %v691 = vld [vmem:[%s8 + $0x78] sm:$0xff]
    %692 = vmatpush.msra.mxu0 %v691
    %693 = vmatpush.msra.mxu0 %v690
    %694 = vmatpush.msra.mxu0 %v689
    %695 = vmatpush.msra.mxu0 %v688
    %696 = vmatpush.msra.mxu0 %v687
    %697 = vmatpush.msra.mxu0 %v686
    %698 = vmatpush.msra.mxu0 %v685
    %699 = vmatpush.msra.mxu0 %v684
    %700 = vmatpush.msra.mxu0 %v683
    %701 = vmatpush.msra.mxu0 %v682
    %702 = vmatpush.msra.mxu0 %v681
    %703 = vmatpush.msra.mxu0 %v680
    %704 = vmatpush.msra.mxu0 %v679
    %705 = vmatpush.msra.mxu0 %v678
    %706 = vmatpush.msra.mxu0 %v677
    %707 = vmatpush.msra.mxu0 %v676
    %708 = vmatmul.f32.gmra.mxu0 %v573
    %v709 = vpop.f32.mrf.mxu0
    %v710 = vadd.f32 0.0, %v709
    %711 = vmatmul.f32.gmra.mxu0 %v576
    %v712 = vpop.f32.mrf.mxu0
    %v713 = vadd.f32 0.0, %v712
    %714 = vmatmul.f32.gmra.mxu0 %v579
    %v715 = vpop.f32.mrf.mxu0
    %v716 = vadd.f32 0.0, %v715
    %717 = vmatmul.f32.gmra.mxu0 %v582
    %v718 = vpop.f32.mrf.mxu0
    %v719 = vadd.f32 0.0, %v718
    %720 = vdwg.mxu0
    %v721 = vadd.f32 %v665, %v710
    %v722 = vadd.f32 %v668, %v713
    %v723 = vadd.f32 %v671, %v716
    %v724 = vadd.f32 %v674, %v719
    %v725 = vld [vmem:[%s9] sm:$0x1]
    %v727 = vperm.slane %v725, 0
    %v729 = vadd.f32 %v721, %v727
    %v730 = vadd.f32 %v722, %v727
    %v731 = vadd.f32 %v723, %v727
    %v732 = vadd.f32 %v724, %v727
    %vm733 = vcmp.gt.f32.partialorder %v729, 0.0
    %vm734 = vcmp.gt.f32.partialorder %v730, 0.0
    %vm735 = vcmp.gt.f32.partialorder %v731, 0.0
    %vm736 = vcmp.gt.f32.partialorder %v732, 0.0
    %v737 = vmul.f32 %v729, 0.1
    %v738 = vmul.f32 %v730, 0.1
    %v739 = vmul.f32 %v731, 0.1
    %v740 = vmul.f32 %v732, 0.1
    %v741 = vsel %vm733, %v729, %v737
    %v742 = vsel %vm734, %v730, %v738
    %v743 = vsel %vm735, %v731, %v739
    %v744 = vsel %vm736, %v732, %v740
    %v745 = vxor.u32 %v741, 2147483648
    %v746 = vxor.u32 %v742, 2147483648
    %v747 = vxor.u32 %v743, 2147483648
    %v748 = vxor.u32 %v744, 2147483648
    %v749 = vmul.f32 %v745, 1.442695
    %v750 = vpow.pop %v749
    %v751 = vmul.f32 %v746, 1.442695
    %v752 = vpow.pop %v751
    %v753 = vmul.f32 %v747, 1.442695
    %v754 = vpow.pop %v753
    %v755 = vmul.f32 %v748, 1.442695
    %v756 = vpow.pop %v755
    %v757 = vadd.f32 %v750, 1.0
    %v758 = vadd.f32 %v752, 1.0
    %v759 = vadd.f32 %v754, 1.0
    %v760 = vadd.f32 %v756, 1.0
    %v761 = vrcp.pop %v757
    %v762 = vmul.f32 %v757, %v761
    %v763 = vsub.f32 1.0, %v762
    %v764 = vmul.f32 %v761, %v763
    %v765 = vadd.f32 %v761, %v764
    %vm766 = vweird.f32 %v757
    %vm767 = vweird.f32 %v761
    %vm768 = vmor %vm766, %vm767
    %v769 = vsel %vm768, %v761, %v765
    %v770 = vand.u32 2147483647, %v757
    %vm771 = vcmp.eq.f32.partialorder %v770, 8.507059e+37
    %v772 = vand.u32 %v757, 2147483648
    %v773 = vor.u32 1.1754944e-38, %v772
    %v774 = vsel %vm771, %v773, %v769
    %v775 = vmul.f32 1.0, %v774
    %v776 = vrcp.pop %v758
    %v777 = vmul.f32 %v758, %v776
    %v778 = vsub.f32 1.0, %v777
    %v779 = vmul.f32 %v776, %v778
    %v780 = vadd.f32 %v776, %v779
    %vm781 = vweird.f32 %v758
    %vm782 = vweird.f32 %v776
    %vm783 = vmor %vm781, %vm782
    %v784 = vsel %vm783, %v776, %v780
    %v785 = vand.u32 2147483647, %v758
    %vm786 = vcmp.eq.f32.partialorder %v785, 8.507059e+37
    %v787 = vand.u32 %v758, 2147483648
    %v788 = vor.u32 1.1754944e-38, %v787
    %v789 = vsel %vm786, %v788, %v784
    %v790 = vmul.f32 1.0, %v789
    %v791 = vrcp.pop %v759
    %v792 = vmul.f32 %v759, %v791
    %v793 = vsub.f32 1.0, %v792
    %v794 = vmul.f32 %v791, %v793
    %v795 = vadd.f32 %v791, %v794
    %vm796 = vweird.f32 %v759
    %vm797 = vweird.f32 %v791
    %vm798 = vmor %vm796, %vm797
    %v799 = vsel %vm798, %v791, %v795
    %v800 = vand.u32 2147483647, %v759
    %vm801 = vcmp.eq.f32.partialorder %v800, 8.507059e+37
    %v802 = vand.u32 %v759, 2147483648
    %v803 = vor.u32 1.1754944e-38, %v802
    %v804 = vsel %vm801, %v803, %v799
    %v805 = vmul.f32 1.0, %v804
    %v806 = vrcp.pop %v760
    %v807 = vmul.f32 %v760, %v806
    %v808 = vsub.f32 1.0, %v807
    %v809 = vmul.f32 %v806, %v808
    %v810 = vadd.f32 %v806, %v809
    %vm811 = vweird.f32 %v760
    %vm812 = vweird.f32 %v806
    %vm813 = vmor %vm811, %vm812
    %v814 = vsel %vm813, %v806, %v810
    %v815 = vand.u32 2147483647, %v760
    %vm816 = vcmp.eq.f32.partialorder %v815, 8.507059e+37
    %v817 = vand.u32 %v760, 2147483648
    %v818 = vor.u32 1.1754944e-38, %v817
    %v819 = vsel %vm816, %v818, %v814
    %v820 = vmul.f32 1.0, %v819
    %821 = vst.msk [vmem:[%s10] sm:$0xff] %vm151, %v775
    %822 = vst.msk [vmem:[%s10 + $0x8] sm:$0xff] %vm151, %v790
    %823 = vst.msk [vmem:[%s10 + $0x10] sm:$0xff] %vm151, %v805
    %824 = vst.msk [vmem:[%s10 + $0x18] sm:$0xff] %vm151, %v820
    %v825 = vld [vmem:[%s1] sm:$0xff]
    %v826 = vld [vmem:[%s1 + $0x8] sm:$0xff]
    %v827 = vld [vmem:[%s1 + $0x10] sm:$0xff]
    %v828 = vld [vmem:[%s1 + $0x18] sm:$0xff]
    %v829 = vsub.f32 %v775, %v825
    %v830 = vsub.f32 %v790, %v826
    %v831 = vsub.f32 %v805, %v827
    %v832 = vsub.f32 %v820, %v828
    %v833 = vmul.f32 %v829, %v829
    %v834 = vmul.f32 %v830, %v830
    %v835 = vmul.f32 %v831, %v831
    %v836 = vmul.f32 %v832, %v832
    %v837 = vsel %vm151, %v833, 0.0
    %v838 = vsel %vm151, %v834, 0.0
    %v839 = vadd.f32 %v837, %v838
    %v840 = vsel %vm151, %v835, 0.0
    %v841 = vadd.f32 %v839, %v840
    %v842 = vsel %vm151, %v836, 0.0
    %v843 = vadd.f32 %v841, %v842
    %844 = vadd.xlane.f32.xlu0 %v843
    %v845 = vpop.xlane.xlu0 %844
    %v846 = vrot.slane %v845, 4
    %v847 = vadd.f32 %v845, %v846
    %v848 = vrot.slane %v847, 2
    %v849 = vadd.f32 %v847, %v848
    %v850 = vrot.slane %v849, 1
    %v851 = vadd.f32 %v849, %v850
    %s852 = vtos %v851
    %s853 = smul.f32 %s852, 0.00048828125
    %s854 = scalar_lea.smem [#allocation2], 0
    %855 = sst [smem:[%s854]] %s853
    // Predicated region
    $region42: #{cnn_forward.1} parent=1 // pred_check
      _
    $region43: #{cnn_forward.1} parent=1 // pred_check_branch
      %857 = sbr.rel (0) target = $region45
    $region44: #{cnn_forward.1} parent=1 // pred_region
      _
    $region45: #{cnn_forward.1} parent=1 // pred_fallthru
      _
    // Predicated region
    $region46: #{cnn_forward.1} parent=1 // pred_check
      _
    $region47: #{cnn_forward.1} parent=1 // pred_check_branch
      %859 = sbr.rel (0) target = $region49
    $region48: #{cnn_forward.1} parent=1 // pred_region
      %861 = vsyncadd [#allocation3], 0
      %s863 = sshll.u32 %s11, 4
      %s864 = int_to_ptr.hbm [resolvable:$true] %s863
      %866 = dma.smem_to_hbm [#allocation2], 16, %s864, [#allocation3]
    $region49: #{cnn_forward.1} parent=1 // pred_fallthru
      _
    // Predicated region
    $region50: #{cnn_forward.1} parent=1 // pred_check
      _
    $region51: #{cnn_forward.1} parent=1 // pred_check_branch
      %868 = sbr.rel (0) target = $region53
    $region52: #{cnn_forward.1} parent=1 // pred_region
      _
    $region53: #{cnn_forward.1} parent=1 // pred_fallthru
      _
    // Predicated region
    $region54: #{cnn_forward.1} parent=1 // pred_check
      _
    $region55: #{cnn_forward.1} parent=1 // pred_check_branch
      %870 = sbr.rel (0) target = $region57
    $region56: #{cnn_forward.1} parent=1 // pred_region
      %872 = dma.done [#allocation3], 16
    $region57: #{cnn_forward.1} parent=1 // pred_fallthru
      _
    %873 = sfence
    %874 = vsyncpa [#allocation3], 1

</llo_original>
